<compile_context>
chip_gen: v6e
topology: v6e:2x2x1
jax: 0.10.0
libtpu: 0.0.40
codegen_flags: <defaults>
</compile_context>

<pallas_src>
import math
import jax
import jax.numpy as jnp
from jax.experimental import pallas as pl
from jax.experimental.pallas import tpu as pltpu


def dueling_qn_kernel(obs_ref, w1_ref, b1_ref, w2_ref, b2_ref, wh_ref, bh_ref,
                      out_ref):
    # fc1 + relu : bf16 MXU operands, f32 accumulation, f32 bias add / ReLU.
    x = obs_ref[...].astype(jnp.bfloat16)
    h1 = jnp.dot(x, w1_ref[...],
                 preferred_element_type=jnp.float32) + b1_ref[...]
    h1 = jnp.maximum(h1, 0.0)
    # fc2 + relu
    h2 = jnp.dot(h1.astype(jnp.bfloat16), w2_ref[...],
                 preferred_element_type=jnp.float32) + b2_ref[...]
    h2 = jnp.maximum(h2, 0.0)
    # Fused [adv | val] head (block-diagonal packed): one matmul, packed out.
    out_ref[...] = (jnp.dot(h2.astype(jnp.bfloat16), wh_ref[...],
                            preferred_element_type=jnp.float32) + bh_ref[...])


def _b_tile(rows):
    """Tile size in packed rows (each packed row = 8 obs rows).

    * >=2 grid steps whenever rows > 8, so v7x's two TensorCores both get
      work under dimension_semantics=("parallel",).
    * <=1024 packed rows (8192 obs rows) per tile: amortizes the ~0.35us
      per-grid-step overhead while keeping per-tile VMEM at a few MiB
      (fine even under v5e's 16 MiB scoped-VMEM default).
    * Multiple of 8 (sublane alignment) unless it equals the full extent.
    """
    if rows <= 8:
        return rows
    bt = min(1024, pl.cdiv(rows, 2))
    return pl.cdiv(bt, 8) * 8


def dueling_qn_forward(obs, params):
    """obs: [B, obs_dim] (f32 or bf16). Returns (adv [B, action_dim], val [B, 1])."""
    B, obs_dim = obs.shape
    pack = params["pack"]
    head_dim = params["head_dim"]          # action_dim + 1
    action_dim = head_dim - 1
    assert obs_dim == params["obs_dim"]

    # Pack `pack` observation rows per MXU LHS row (row-major reshape = free).
    B_pad = pl.cdiv(B, pack) * pack
    if B_pad != B:
        obs = jnp.pad(obs, ((0, B_pad - B), (0, 0)))
    rows = B_pad // pack
    obs_packed = obs.reshape(rows, pack * obs_dim)

    bt = _b_tile(rows)

    def resident(arr):
        # Whole-array block that stays VMEM-resident across the batch grid.
        return pl.BlockSpec(arr.shape, lambda i: (0, 0))

    # Advisory cost (logical flops/bytes per original row) for XLA's scheduler.
    cost = pl.CostEstimate(
        flops=2 * B_pad * (obs_dim * 64 + 64 * 32 + 32 * head_dim),
        bytes_accessed=B_pad * 4 * (obs_dim + head_dim),
        transcendentals=0)

    out_packed = pl.pallas_call(
        dueling_qn_kernel,
        out_shape=jax.ShapeDtypeStruct((rows, pack * head_dim), jnp.float32),
        grid=(pl.cdiv(rows, bt),),
        in_specs=[
            pl.BlockSpec((bt, pack * obs_dim), lambda i: (i, 0)),
            resident(params["w1"]), resident(params["b1"]),
            resident(params["w2"]), resident(params["b2"]),
            resident(params["wh"]), resident(params["bh"]),
        ],
        out_specs=pl.BlockSpec((bt, pack * head_dim), lambda i: (i, 0)),
        compiler_params=pltpu.CompilerParams(
            dimension_semantics=("parallel",)),
        cost_estimate=cost,
    )(obs_packed, params["w1"], params["b1"], params["w2"], params["b2"],
      params["wh"], params["bh"])

    # [rows, pack*head_dim] -> [B_pad, head_dim] is a free row-major reshape.
    out = out_packed.reshape(B_pad, head_dim)[:B]
    # Original module returns separate (adv, val); the slices are tiny.
    # (A consumer that wants Q = V + A - mean(A) could instead take `out`.)
    return out[:, :action_dim], out[:, action_dim:]


def _xavier_normal(key, out_dim, in_dim):
    # matches torch nn.init.xavier_normal (gain=1): std = sqrt(2/(fan_in+fan_out))
    std = math.sqrt(2.0 / (in_dim + out_dim))
    return std * jax.random.normal(key, (out_dim, in_dim), dtype=jnp.float32)


def _linear_bias(key, out_dim, in_dim):
    # PyTorch default Linear bias init: U(-1/sqrt(fan_in), 1/sqrt(fan_in))
    bound = 1.0 / math.sqrt(in_dim)
    return jax.random.uniform(key, (out_dim,), dtype=jnp.float32,
                              minval=-bound, maxval=bound)


def init_params(key, obs_dim, action_dim, pack=8):
    ks = jax.random.split(key, 8)
    head_dim = action_dim + 1
    # PyTorch-layout [out, in] weights, matching DuelingQN's initializers.
    w1 = _xavier_normal(ks[0], 64, obs_dim)
    b1 = _linear_bias(ks[1], 64, obs_dim)
    w2 = _xavier_normal(ks[2], 32, 64)
    b2 = _linear_bias(ks[3], 32, 64)
    wadv = jax.random.uniform(ks[4], (action_dim, 32), dtype=jnp.float32,
                              minval=-0.002, maxval=0.002)
    badv = _linear_bias(ks[5], action_dim, 32)
    wval = jax.random.uniform(ks[6], (1, 32), dtype=jnp.float32,
                              minval=-0.002, maxval=0.002)
    bval = _linear_bias(ks[7], 1, 32)

    # Kernel layout: [in, out], adv/val fused into one head.
    w1t = w1.T                                       # [obs_dim, 64]
    w2t = w2.T                                       # [64, 32]
    wh = jnp.concatenate([wadv.T, wval.T], axis=1)   # [32, head_dim]
    bh = jnp.concatenate([badv, bval])               # [head_dim]

    def blkdiag(w):
        # [in, out] -> block-diagonal [pack*in, pack*out]
        return jnp.kron(jnp.eye(pack, dtype=w.dtype), w)

    return {
        "pack": pack,
        "obs_dim": obs_dim,
        "head_dim": head_dim,
        # Block-diagonal bf16 MXU weights + 8x-tiled f32 bias rows.
        "w1": blkdiag(w1t).astype(jnp.bfloat16),     # [pack*obs_dim, pack*64]
        "b1": jnp.tile(b1, pack)[None, :],           # [1, pack*64]
        "w2": blkdiag(w2t).astype(jnp.bfloat16),     # [pack*64, pack*32]
        "b2": jnp.tile(b2, pack)[None, :],           # [1, pack*32]
        "wh": blkdiag(wh).astype(jnp.bfloat16),      # [pack*32, pack*head_dim]
        "bh": jnp.tile(bh, pack)[None, :],           # [1, pack*head_dim]
        # Unpacked copies (same bf16-operand / f32-accum path) for the reference.
        "ref": {
            "w1": w1t.astype(jnp.bfloat16), "b1": b1[None, :],
            "w2": w2t.astype(jnp.bfloat16), "b2": b2[None, :],
            "wh": wh.astype(jnp.bfloat16),  "bh": bh[None, :],
        },
    }


def reference_forward(obs, params):
    """Pure-JAX reference doing the same bf16-operand / f32-accum math."""
    r = params["ref"]
    h1 = jnp.maximum(
        jnp.dot(obs.astype(jnp.bfloat16), r["w1"],
                preferred_element_type=jnp.float32) + r["b1"], 0.0)
    h2 = jnp.maximum(
        jnp.dot(h1.astype(jnp.bfloat16), r["w2"],
                preferred_element_type=jnp.float32) + r["b2"], 0.0)
    out = jnp.dot(h2.astype(jnp.bfloat16), r["wh"],
                  preferred_element_type=jnp.float32) + r["bh"]
    action_dim = r["bh"].shape[-1] - 1
    return out[:, :action_dim], out[:, action_dim:]


if __name__ == "__main__":
    key = jax.random.PRNGKey(0)
    k_obs, k_obs_odd, k_obs_big, k_params = jax.random.split(key, 4)

    obs_dim, action_dim = 16, 4
    params = init_params(k_params, obs_dim, action_dim)

    # Small batch: one packed row, single grid step.
    obs = jax.random.normal(k_obs, (8, obs_dim), dtype=jnp.float32)
    adv, val = jax.block_until_ready(dueling_qn_forward(obs, params))
    adv_ref, val_ref = reference_forward(obs, params)
    assert adv.shape == (8, action_dim) and val.shape == (8, 1)
    assert jnp.allclose(adv, adv_ref, atol=1e-2, rtol=1e-2)
    assert jnp.allclose(val, val_ref, atol=1e-2, rtol=1e-2)

    # Batch not a multiple of 8: exercises the zero-pad-and-slice path.
    obs_odd = jax.random.normal(k_obs_odd, (12, obs_dim), dtype=jnp.float32)
    adv_o, val_o = jax.block_until_ready(dueling_qn_forward(obs_odd, params))
    adv_oref, val_oref = reference_forward(obs_odd, params)
    assert adv_o.shape == (12, action_dim) and val_o.shape == (12, 1)
    assert jnp.allclose(adv_o, adv_oref, atol=1e-2, rtol=1e-2)
    assert jnp.allclose(val_o, val_oref, atol=1e-2, rtol=1e-2)

    # Larger batch: 256 packed rows -> two parallel 128-row tiles (pipelined,
    # and shardable across v7x's two TensorCores).
    obs_big = jax.random.normal(k_obs_big, (2048, obs_dim), dtype=jnp.float32)
    adv_b, val_b = jax.block_until_ready(dueling_qn_forward(obs_big, params))
    adv_bref, val_bref = reference_forward(obs_big, params)
    assert adv_b.shape == (2048, action_dim) and val_b.shape == (2048, 1)
    assert jnp.allclose(adv_b, adv_bref, atol=1e-2, rtol=1e-2)
    assert jnp.allclose(val_b, val_bref, atol=1e-2, rtol=1e-2)

    print("KERNEL_OK")
</pallas_src>

<mosaic_0001>
module attributes {stable_mosaic.version = 11 : i64} {
  func.func @dueling_qn_kernel(%arg0: i32, %arg1: memref<1x128xf32, #tpu.memory_space<vmem>>, %arg2: memref<128x512xbf16, #tpu.memory_space<vmem>>, %arg3: memref<1x512xf32, #tpu.memory_space<vmem>>, %arg4: memref<512x256xbf16, #tpu.memory_space<vmem>>, %arg5: memref<1x256xf32, #tpu.memory_space<vmem>>, %arg6: memref<256x40xbf16, #tpu.memory_space<vmem>>, %arg7: memref<1x40xf32, #tpu.memory_space<vmem>>, %arg8: memref<1x40xf32, #tpu.memory_space<vmem>>) attributes {dimension_semantics = [#tpu.dimension_semantics<parallel>], iteration_bounds = array<i64: 1>, scalar_prefetch = 0 : i64, scratch_operands = 0 : i64, tpu.core_type = #tpu.core_type<tc>, window_params = [{transform_indices = @transform_0, window_bounds = array<i64: 1, 128>}, {pipeline_mode = #tpu.pipeline_mode<synchronous>, transform_indices = @transform_1, window_bounds = array<i64: 128, 512>}, {pipeline_mode = #tpu.pipeline_mode<synchronous>, transform_indices = @transform_2, window_bounds = array<i64: 1, 512>}, {pipeline_mode = #tpu.pipeline_mode<synchronous>, transform_indices = @transform_3, window_bounds = array<i64: 512, 256>}, {pipeline_mode = #tpu.pipeline_mode<synchronous>, transform_indices = @transform_4, window_bounds = array<i64: 1, 256>}, {pipeline_mode = #tpu.pipeline_mode<synchronous>, transform_indices = @transform_5, window_bounds = array<i64: 256, 40>}, {pipeline_mode = #tpu.pipeline_mode<synchronous>, transform_indices = @transform_6, window_bounds = array<i64: 1, 40>}, {transform_indices = @transform_7, window_bounds = array<i64: 1, 40>}]} {
    %c0 = arith.constant 0 : index
    %c0_0 = arith.constant 0 : index
    %0 = vector.load %arg1[%c0, %c0_0] : memref<1x128xf32, #tpu.memory_space<vmem>>, vector<1x128xf32>
    %1 = arith.truncf %0 : vector<1x128xf32> to vector<1x128xbf16>
    %c0_1 = arith.constant 0 : index
    %c0_2 = arith.constant 0 : index
    %2 = vector.load %arg2[%c0_1, %c0_2] : memref<128x512xbf16, #tpu.memory_space<vmem>>, vector<128x512xbf16>
    %cst = arith.constant dense<0.000000e+00> : vector<1x512xf32>
    %3 = tpu.matmul %1, %2, %cst {dimension_numbers = #tpu.dot_dimension_numbers<[1], [0], [0], [1], [0, 0, 1, 1], [], []>} : vector<1x128xbf16>, vector<128x512xbf16>, vector<1x512xf32> -> vector<1x512xf32>
    %c0_3 = arith.constant 0 : index
    %c0_4 = arith.constant 0 : index
    %4 = vector.load %arg3[%c0_3, %c0_4] : memref<1x512xf32, #tpu.memory_space<vmem>>, vector<1x512xf32>
    %5 = arith.addf %3, %4 : vector<1x512xf32>
    %cst_5 = arith.constant 0.000000e+00 : f32
    %6 = vector.broadcast %cst_5 : f32 to vector<1x512xf32>
    %7 = arith.maximumf %5, %6 : vector<1x512xf32>
    %8 = arith.truncf %7 : vector<1x512xf32> to vector<1x512xbf16>
    %c0_6 = arith.constant 0 : index
    %c0_7 = arith.constant 0 : index
    %9 = vector.load %arg4[%c0_6, %c0_7] : memref<512x256xbf16, #tpu.memory_space<vmem>>, vector<512x256xbf16>
    %cst_8 = arith.constant dense<0.000000e+00> : vector<1x256xf32>
    %10 = tpu.matmul %8, %9, %cst_8 {dimension_numbers = #tpu.dot_dimension_numbers<[1], [0], [0], [1], [0, 0, 1, 1], [], []>} : vector<1x512xbf16>, vector<512x256xbf16>, vector<1x256xf32> -> vector<1x256xf32>
    %c0_9 = arith.constant 0 : index
    %c0_10 = arith.constant 0 : index
    %11 = vector.load %arg5[%c0_9, %c0_10] : memref<1x256xf32, #tpu.memory_space<vmem>>, vector<1x256xf32>
    %12 = arith.addf %10, %11 : vector<1x256xf32>
    %cst_11 = arith.constant 0.000000e+00 : f32
    %13 = vector.broadcast %cst_11 : f32 to vector<1x256xf32>
    %14 = arith.maximumf %12, %13 : vector<1x256xf32>
    %15 = arith.truncf %14 : vector<1x256xf32> to vector<1x256xbf16>
    %c0_12 = arith.constant 0 : index
    %c0_13 = arith.constant 0 : index
    %16 = vector.load %arg6[%c0_12, %c0_13] : memref<256x40xbf16, #tpu.memory_space<vmem>>, vector<256x40xbf16>
    %cst_14 = arith.constant dense<0.000000e+00> : vector<1x40xf32>
    %17 = tpu.matmul %15, %16, %cst_14 {dimension_numbers = #tpu.dot_dimension_numbers<[1], [0], [0], [1], [0, 0, 1, 1], [], []>} : vector<1x256xbf16>, vector<256x40xbf16>, vector<1x40xf32> -> vector<1x40xf32>
    %c0_15 = arith.constant 0 : index
    %c0_16 = arith.constant 0 : index
    %18 = vector.load %arg7[%c0_15, %c0_16] : memref<1x40xf32, #tpu.memory_space<vmem>>, vector<1x40xf32>
    %19 = arith.addf %17, %18 : vector<1x40xf32>
    %c0_17 = arith.constant 0 : index
    %c0_18 = arith.constant 0 : index
    %20 = vector.load %arg8[%c0_17, %c0_18] : memref<1x40xf32, #tpu.memory_space<vmem>>, vector<1x40xf32>
    tpu.vector_store %arg8[%c0_17, %c0_18], %19 {strides = array<i32>} : memref<1x40xf32, #tpu.memory_space<vmem>>, vector<1x40xf32>,
    return
  }
  func.func @transform_0(%arg0: i32) -> (i32, i32) {
    %c0_i32 = arith.constant 0 : i32
    %c0_i32_0 = arith.constant 0 : i32
    return %arg0, %c0_i32 : i32, i32
  }
  func.func @transform_1(%arg0: i32) -> (i32, i32) {
    %c0_i32 = arith.constant 0 : i32
    %c0_i32_0 = arith.constant 0 : i32
    %c0_i32_1 = arith.constant 0 : i32
    return %c0_i32, %c0_i32_0 : i32, i32
  }
  func.func @transform_2(%arg0: i32) -> (i32, i32) {
    %c0_i32 = arith.constant 0 : i32
    %c0_i32_0 = arith.constant 0 : i32
    %c0_i32_1 = arith.constant 0 : i32
    return %c0_i32, %c0_i32_0 : i32, i32
  }
  func.func @transform_3(%arg0: i32) -> (i32, i32) {
    %c0_i32 = arith.constant 0 : i32
    %c0_i32_0 = arith.constant 0 : i32
    %c0_i32_1 = arith.constant 0 : i32
    return %c0_i32, %c0_i32_0 : i32, i32
  }
  func.func @transform_4(%arg0: i32) -> (i32, i32) {
    %c0_i32 = arith.constant 0 : i32
    %c0_i32_0 = arith.constant 0 : i32
    %c0_i32_1 = arith.constant 0 : i32
    return %c0_i32, %c0_i32_0 : i32, i32
  }
  func.func @transform_5(%arg0: i32) -> (i32, i32) {
    %c0_i32 = arith.constant 0 : i32
    %c0_i32_0 = arith.constant 0 : i32
    %c0_i32_1 = arith.constant 0 : i32
    return %c0_i32, %c0_i32_0 : i32, i32
  }
  func.func @transform_6(%arg0: i32) -> (i32, i32) {
    %c0_i32 = arith.constant 0 : i32
    %c0_i32_0 = arith.constant 0 : i32
    %c0_i32_1 = arith.constant 0 : i32
    return %c0_i32, %c0_i32_0 : i32, i32
  }
  func.func @transform_7(%arg0: i32) -> (i32, i32) {
    %c0_i32 = arith.constant 0 : i32
    %c0_i32_0 = arith.constant 0 : i32
    return %arg0, %c0_i32 : i32, i32
  }
}

</mosaic_0001>

<llo_original>
// kernel: tpu_custom_call.1
$region0: #{tpu_custom_call.1}
  #allocation0 [shape = 'u32[]', space=smem, size = 0x4, offset = 0x4, fixed_abs, tag = 'smem constant byte address 0x4 - core index']
  #allocation1 [shape = 'u32[144,128]{1,0:T(1,128)}', space=vmem, size = 0x12000, scoped, tag = 'internal scratch']
  %s0 = inlined_call_operand.vmem [shape: f32[1,128], index: 0, kind: input, shape index: {}]
  %s1 = inlined_call_operand.hbm [shape: bf16[128,512], index: 1, kind: input, shape index: {}]
  %s2 = inlined_call_operand.vmem [shape: f32[1,512], index: 2, kind: input, shape index: {}]
  %s3 = inlined_call_operand.hbm [shape: bf16[512,256], index: 3, kind: input, shape index: {}]
  %s4 = inlined_call_operand.vmem [shape: f32[1,256], index: 4, kind: input, shape index: {}]
  %s5 = inlined_call_operand.vmem [shape: bf16[256,40], index: 5, kind: input, shape index: {}]
  %s6 = inlined_call_operand.vmem [shape: f32[1,40], index: 6, kind: input, shape index: {}]
  %s7 = inlined_call_operand.hbm [shape: f32[1,40], index: 7, kind: output, shape index: {}]
  %s8 = sld [smem:[#allocation0]]
  $region46: #{tpu_custom_call.1} parent=0
    _
  %s10 = ssub.s32 1, %s8
  %s11 = scalar_select 0, %s10, %s8
  $region1: #{tpu_custom_call.1} parent=0
    #allocation2 [shape = 'u8[131072]{0}', space=vmem, size = 0x20000, scoped, tag = 'input window, operand 1, single buffered']
    #allocation3 [shape = 's32[1]{0}', space=sflag, size = 0x4, scoped, tag = 'scoped memory for tpu_custom_call.1']
    #allocation4 [shape = 's32[1]{0}', space=sflag, size = 0x4, scoped, tag = 'scoped memory for tpu_custom_call.1']
    #allocation5 [shape = 'u8[262144]{0}', space=vmem, size = 0x40000, scoped, tag = 'input window, operand 3, single buffered']
    #allocation6 [shape = 's32[1]{0}', space=sflag, size = 0x4, scoped, tag = 'scoped memory for tpu_custom_call.1']
    #allocation7 [shape = 'u8[512]{0}', space=vmem, size = 0x400, scoped, tag = 'output window, operand 0, single buffered']
    %12 = vsyncpa [#allocation3], 0
    %13 = vsyncpa [#allocation6], 0
    %14 = vsyncpa [#allocation4], 0
    // Predicated region
    $region2: #{tpu_custom_call.1} parent=1 // pred_check
      _
    $region3: #{tpu_custom_call.1} parent=1 // pred_check_branch
      %16 = sbr.rel (0) target = $region5
    $region4: #{tpu_custom_call.1} parent=1 // pred_region
      _
    $region5: #{tpu_custom_call.1} parent=1 // pred_fallthru
      _
    // Predicated region
    $region6: #{tpu_custom_call.1} parent=1 // pred_check
      _
    $region7: #{tpu_custom_call.1} parent=1 // pred_check_branch
      %18 = sbr.rel (0) target = $region9
    $region8: #{tpu_custom_call.1} parent=1 // pred_region
      %s20 = ssub.s32 4096, 4096
      %21 = vsyncadd [#allocation3], %s20
      %s22 = sshll.u32 [#allocation2], 4
      %s23 = int_to_ptr.vmem [resolvable:$true] %s22
      %28 = dma.hbm_to_vmem [thread:$0]  %s1, 4096, %s23, [#allocation3], 256, 256, 16
    $region9: #{tpu_custom_call.1} parent=1 // pred_fallthru
      _
    // Predicated region
    $region10: #{tpu_custom_call.1} parent=1 // pred_check
      _
    $region11: #{tpu_custom_call.1} parent=1 // pred_check_branch
      %30 = sbr.rel (0) target = $region13
    $region12: #{tpu_custom_call.1} parent=1 // pred_region
      _
    $region13: #{tpu_custom_call.1} parent=1 // pred_fallthru
      _
    // Predicated region
    $region14: #{tpu_custom_call.1} parent=1 // pred_check
      _
    $region15: #{tpu_custom_call.1} parent=1 // pred_check_branch
      %32 = sbr.rel (0) target = $region17
    $region16: #{tpu_custom_call.1} parent=1 // pred_region
      %s34 = ssub.s32 8192, 8192
      %35 = vsyncadd [#allocation6], %s34
      %s36 = sshll.u32 [#allocation5], 4
      %s37 = int_to_ptr.vmem [resolvable:$true] %s36
      %42 = dma.hbm_to_vmem [thread:$0]  %s3, 8192, %s37, [#allocation6], 128, 128, 8
    $region17: #{tpu_custom_call.1} parent=1 // pred_fallthru
      _
    // Predicated region
    $region18: #{tpu_custom_call.1} parent=1 // pred_check
      _
    $region19: #{tpu_custom_call.1} parent=1 // pred_check_branch
      %44 = sbr.rel (0) target = $region21
    $region20: #{tpu_custom_call.1} parent=1 // pred_region
      _
    $region21: #{tpu_custom_call.1} parent=1 // pred_fallthru
      _
    // Predicated region
    $region22: #{tpu_custom_call.1} parent=1 // pred_check
      _
    $region23: #{tpu_custom_call.1} parent=1 // pred_check_branch
      %46 = sbr.rel (0) target = $region25
    $region24: #{tpu_custom_call.1} parent=1 // pred_region
      _
    $region25: #{tpu_custom_call.1} parent=1 // pred_fallthru
      _
    // Predicated region
    $region26: #{tpu_custom_call.1} parent=1 // pred_check
      _
    $region27: #{tpu_custom_call.1} parent=1 // pred_check_branch
      %48 = sbr.rel (0) target = $region29
    $region28: #{tpu_custom_call.1} parent=1 // pred_region
      _
    $region29: #{tpu_custom_call.1} parent=1 // pred_fallthru
      _
    // Predicated region
    $region30: #{tpu_custom_call.1} parent=1 // pred_check
      _
    $region31: #{tpu_custom_call.1} parent=1 // pred_check_branch
      %50 = sbr.rel (0) target = $region33
    $region32: #{tpu_custom_call.1} parent=1 // pred_region
      %51 = dma.done [#allocation3], 4096
    $region33: #{tpu_custom_call.1} parent=1 // pred_fallthru
      _
    // Predicated region
    $region34: #{tpu_custom_call.1} parent=1 // pred_check
      _
    $region35: #{tpu_custom_call.1} parent=1 // pred_check_branch
      %53 = sbr.rel (0) target = $region37
    $region36: #{tpu_custom_call.1} parent=1 // pred_region
      %54 = dma.done [#allocation6], 8192
    $region37: #{tpu_custom_call.1} parent=1 // pred_fallthru
      _
    %v56 = vld [vmem:[%s0] sm:$0x1]
    %v57 = vpack.c.bf16 %v56, %v56
    %v58 = vld [vmem:[#allocation2] sm:$0xff]
    %v59 = vld [vmem:[#allocation2 + $0x8] sm:$0xff]
    %v60 = vld [vmem:[#allocation2 + $0x10] sm:$0xff]
    %v61 = vld [vmem:[#allocation2 + $0x18] sm:$0xff]
    %v62 = vld [vmem:[#allocation2 + $0x20] sm:$0xff]
    %v63 = vld [vmem:[#allocation2 + $0x28] sm:$0xff]
    %v64 = vld [vmem:[#allocation2 + $0x30] sm:$0xff]
    %v65 = vld [vmem:[#allocation2 + $0x38] sm:$0xff]
    %v66 = vld [vmem:[#allocation2 + $0x40] sm:$0xff]
    %v67 = vld [vmem:[#allocation2 + $0x48] sm:$0xff]
    %v68 = vld [vmem:[#allocation2 + $0x50] sm:$0xff]
    %v69 = vld [vmem:[#allocation2 + $0x58] sm:$0xff]
    %v70 = vld [vmem:[#allocation2 + $0x60] sm:$0xff]
    %v71 = vld [vmem:[#allocation2 + $0x68] sm:$0xff]
    %v72 = vld [vmem:[#allocation2 + $0x70] sm:$0xff]
    %v73 = vld [vmem:[#allocation2 + $0x78] sm:$0xff]
    %v74 = vld [vmem:[#allocation2 + $0x80] sm:$0xff]
    %v75 = vld [vmem:[#allocation2 + $0x88] sm:$0xff]
    %v76 = vld [vmem:[#allocation2 + $0x90] sm:$0xff]
    %v77 = vld [vmem:[#allocation2 + $0x98] sm:$0xff]
    %v78 = vld [vmem:[#allocation2 + $0xa0] sm:$0xff]
    %v79 = vld [vmem:[#allocation2 + $0xa8] sm:$0xff]
    %v80 = vld [vmem:[#allocation2 + $0xb0] sm:$0xff]
    %v81 = vld [vmem:[#allocation2 + $0xb8] sm:$0xff]
    %v82 = vld [vmem:[#allocation2 + $0xc0] sm:$0xff]
    %v83 = vld [vmem:[#allocation2 + $0xc8] sm:$0xff]
    %v84 = vld [vmem:[#allocation2 + $0xd0] sm:$0xff]
    %v85 = vld [vmem:[#allocation2 + $0xd8] sm:$0xff]
    %v86 = vld [vmem:[#allocation2 + $0xe0] sm:$0xff]
    %v87 = vld [vmem:[#allocation2 + $0xe8] sm:$0xff]
    %v88 = vld [vmem:[#allocation2 + $0xf0] sm:$0xff]
    %v89 = vld [vmem:[#allocation2 + $0xf8] sm:$0xff]
    %v90 = vld [vmem:[%s2] sm:$0xf]
    %v123 = vunpack.c.l.b16 %v58
    %v124 = vunpack.c.h.b16 %v58
    %v125 = vunpack.c.l.b16 %v59
    %v126 = vunpack.c.h.b16 %v59
    %v127 = vunpack.c.l.b16 %v60
    %v128 = vunpack.c.h.b16 %v60
    %v129 = vunpack.c.l.b16 %v61
    %v130 = vunpack.c.h.b16 %v61
    %v131 = vunpack.c.l.b16 %v62
    %v132 = vunpack.c.h.b16 %v62
    %v133 = vunpack.c.l.b16 %v63
    %v134 = vunpack.c.h.b16 %v63
    %v135 = vunpack.c.l.b16 %v64
    %v136 = vunpack.c.h.b16 %v64
    %v137 = vunpack.c.l.b16 %v65
    %v138 = vunpack.c.h.b16 %v65
    %v139 = vunpack.c.l.b16 %v66
    %v140 = vunpack.c.h.b16 %v66
    %v141 = vunpack.c.l.b16 %v67
    %v142 = vunpack.c.h.b16 %v67
    %v143 = vunpack.c.l.b16 %v68
    %v144 = vunpack.c.h.b16 %v68
    %v145 = vunpack.c.l.b16 %v69
    %v146 = vunpack.c.h.b16 %v69
    %v147 = vunpack.c.l.b16 %v70
    %v148 = vunpack.c.h.b16 %v70
    %v149 = vunpack.c.l.b16 %v71
    %v150 = vunpack.c.h.b16 %v71
    %v151 = vunpack.c.l.b16 %v72
    %v152 = vunpack.c.h.b16 %v72
    %v153 = vunpack.c.l.b16 %v73
    %v154 = vunpack.c.h.b16 %v73
    %v155 = vunpack.c.l.b16 %v74
    %v156 = vunpack.c.h.b16 %v74
    %v157 = vunpack.c.l.b16 %v75
    %v158 = vunpack.c.h.b16 %v75
    %v159 = vunpack.c.l.b16 %v76
    %v160 = vunpack.c.h.b16 %v76
    %v161 = vunpack.c.l.b16 %v77
    %v162 = vunpack.c.h.b16 %v77
    %v163 = vunpack.c.l.b16 %v78
    %v164 = vunpack.c.h.b16 %v78
    %v165 = vunpack.c.l.b16 %v79
    %v166 = vunpack.c.h.b16 %v79
    %v167 = vunpack.c.l.b16 %v80
    %v168 = vunpack.c.h.b16 %v80
    %v169 = vunpack.c.l.b16 %v81
    %v170 = vunpack.c.h.b16 %v81
    %v171 = vunpack.c.l.b16 %v82
    %v172 = vunpack.c.h.b16 %v82
    %v173 = vunpack.c.l.b16 %v83
    %v174 = vunpack.c.h.b16 %v83
    %v175 = vunpack.c.l.b16 %v84
    %v176 = vunpack.c.h.b16 %v84
    %v177 = vunpack.c.l.b16 %v85
    %v178 = vunpack.c.h.b16 %v85
    %v179 = vunpack.c.l.b16 %v86
    %v180 = vunpack.c.h.b16 %v86
    %v181 = vunpack.c.l.b16 %v87
    %v182 = vunpack.c.h.b16 %v87
    %v183 = vunpack.c.l.b16 %v88
    %v184 = vunpack.c.h.b16 %v88
    %v185 = vunpack.c.l.b16 %v89
    %v186 = vunpack.c.h.b16 %v89
    %v187 = vpack.c.b16 %v127, %v123
    %v188 = vpack.c.b16 %v128, %v124
    %v189 = vpack.c.b16 %v129, %v125
    %v190 = vpack.c.b16 %v130, %v126
    %v191 = vpack.c.b16 %v135, %v131
    %v192 = vpack.c.b16 %v136, %v132
    %v193 = vpack.c.b16 %v137, %v133
    %v194 = vpack.c.b16 %v138, %v134
    %v195 = vpack.c.b16 %v143, %v139
    %v196 = vpack.c.b16 %v144, %v140
    %v197 = vpack.c.b16 %v145, %v141
    %v198 = vpack.c.b16 %v146, %v142
    %v199 = vpack.c.b16 %v151, %v147
    %v200 = vpack.c.b16 %v152, %v148
    %v201 = vpack.c.b16 %v153, %v149
    %v202 = vpack.c.b16 %v154, %v150
    %v203 = vpack.c.b16 %v159, %v155
    %v204 = vpack.c.b16 %v160, %v156
    %v205 = vpack.c.b16 %v161, %v157
    %v206 = vpack.c.b16 %v162, %v158
    %v207 = vpack.c.b16 %v167, %v163
    %v208 = vpack.c.b16 %v168, %v164
    %v209 = vpack.c.b16 %v169, %v165
    %v210 = vpack.c.b16 %v170, %v166
    %v211 = vpack.c.b16 %v175, %v171
    %v212 = vpack.c.b16 %v176, %v172
    %v213 = vpack.c.b16 %v177, %v173
    %v214 = vpack.c.b16 %v178, %v174
    %v215 = vpack.c.b16 %v183, %v179
    %v216 = vpack.c.b16 %v184, %v180
    %v217 = vpack.c.b16 %v185, %v181
    %v218 = vpack.c.b16 %v186, %v182
    %v252 = vlaneseq
    %v253 = vshrl.u32 %v252, 7
    %v254 = vsub.s32 0, %v253
    %v255 = vrot.slane %v90, %v254
    %v256 = vlaneseq
    %v257 = vshrl.u32 %v256, 7
    %v258 = vsub.s32 1, %v257
    %v259 = vrot.slane %v90, %v258
    %v260 = vlaneseq
    %v261 = vshrl.u32 %v260, 7
    %v262 = vsub.s32 2, %v261
    %v263 = vrot.slane %v90, %v262
    %v264 = vlaneseq
    %v265 = vshrl.u32 %v264, 7
    %v266 = vsub.s32 3, %v265
    %v267 = vrot.slane %v90, %v266
    %272 = vmatprep.subr.bf16.mxu0 %v216
    %273 = vmatpush1.bf16.msra.mxu0 %v215
    %274 = vmatprep.subr.bf16.mxu0 %v212
    %275 = vmatpush1.bf16.msra.mxu0 %v211
    %276 = vmatprep.subr.bf16.mxu0 %v208
    %277 = vmatpush1.bf16.msra.mxu0 %v207
    %278 = vmatprep.subr.bf16.mxu0 %v204
    %279 = vmatpush1.bf16.msra.mxu0 %v203
    %280 = vmatprep.subr.bf16.mxu0 %v200
    %281 = vmatpush1.bf16.msra.mxu0 %v199
    %282 = vmatprep.subr.bf16.mxu0 %v196
    %283 = vmatpush1.bf16.msra.mxu0 %v195
    %284 = vmatprep.subr.bf16.mxu0 %v192
    %285 = vmatpush1.bf16.msra.mxu0 %v191
    %286 = vmatprep.subr.bf16.mxu0 %v188
    %287 = vmatpush1.bf16.msra.mxu0 %v187
    %288 = vmatprep.subr.bf16.mxu0 0
    %289 = vmatpush2.bf16.msra.mxu0 0
    %290 = vmatprep.subr.bf16.mxu0 0
    %291 = vmatpush2.bf16.msra.mxu0 0
    %292 = vmatprep.subr.bf16.mxu0 0
    %293 = vmatpush2.bf16.msra.mxu0 0
    %294 = vmatprep.subr.bf16.mxu0 0
    %295 = vmatpush2.bf16.msra.mxu0 0
    %296 = vmatprep.subr.bf16.mxu0 0
    %297 = vmatpush2.bf16.msra.mxu0 0
    %298 = vmatprep.subr.bf16.mxu0 0
    %299 = vmatpush2.bf16.msra.mxu0 0
    %300 = vmatprep.subr.bf16.mxu0 0
    %301 = vmatpush2.bf16.msra.mxu0 0
    %302 = vmatprep.subr.bf16.mxu0 0
    %303 = vmatpush2.bf16.msra.mxu0 0
    %304 = vmatprep.mubr.bf16.mxu0 0
    %305 = vmatmul.mubr.bf16.gmra.mxu0 %v57
    %v306 = vpop.f32.mrf.mxu0
    %v307 = vadd.f32 %v255, %v306
    %v308 = vpop.f32.mrf.mxu0
    %v309 = vadd.f32 %v259, %v308
    %v310 = vpop.f32.mrf.mxu0
    %v311 = vpop.f32.mrf.mxu0
    %312 = vdwg.mxu0
    %313 = vmatprep.subr.bf16.mxu0 %v218
    %314 = vmatpush1.bf16.msra.mxu0 %v217
    %315 = vmatprep.subr.bf16.mxu0 %v214
    %316 = vmatpush1.bf16.msra.mxu0 %v213
    %317 = vmatprep.subr.bf16.mxu0 %v210
    %318 = vmatpush1.bf16.msra.mxu0 %v209
    %319 = vmatprep.subr.bf16.mxu0 %v206
    %320 = vmatpush1.bf16.msra.mxu0 %v205
    %321 = vmatprep.subr.bf16.mxu0 %v202
    %322 = vmatpush1.bf16.msra.mxu0 %v201
    %323 = vmatprep.subr.bf16.mxu0 %v198
    %324 = vmatpush1.bf16.msra.mxu0 %v197
    %325 = vmatprep.subr.bf16.mxu0 %v194
    %326 = vmatpush1.bf16.msra.mxu0 %v193
    %327 = vmatprep.subr.bf16.mxu0 %v190
    %328 = vmatpush1.bf16.msra.mxu0 %v189
    %329 = vmatprep.subr.bf16.mxu0 0
    %330 = vmatpush2.bf16.msra.mxu0 0
    %331 = vmatprep.subr.bf16.mxu0 0
    %332 = vmatpush2.bf16.msra.mxu0 0
    %333 = vmatprep.subr.bf16.mxu0 0
    %334 = vmatpush2.bf16.msra.mxu0 0
    %335 = vmatprep.subr.bf16.mxu0 0
    %336 = vmatpush2.bf16.msra.mxu0 0
    %337 = vmatprep.subr.bf16.mxu0 0
    %338 = vmatpush2.bf16.msra.mxu0 0
    %339 = vmatprep.subr.bf16.mxu0 0
    %340 = vmatpush2.bf16.msra.mxu0 0
    %341 = vmatprep.subr.bf16.mxu0 0
    %342 = vmatpush2.bf16.msra.mxu0 0
    %343 = vmatprep.subr.bf16.mxu0 0
    %344 = vmatpush2.bf16.msra.mxu0 0
    %345 = vmatprep.mubr.bf16.mxu0 0
    %346 = vmatmul.mubr.bf16.gmra.mxu0 %v57
    %v347 = vpop.f32.mrf.mxu0
    %v348 = vadd.f32 %v263, %v347
    %v349 = vpop.f32.mrf.mxu0
    %v350 = vadd.f32 %v267, %v349
    %v351 = vpop.f32.mrf.mxu0
    %v352 = vpop.f32.mrf.mxu0
    %353 = vdwg.mxu0
    %v354 = vmax.f32 %v307, 0.0
    %v355 = vmax.f32 %v309, 0.0
    %v356 = vmax.f32 %v348, 0.0
    %v357 = vmax.f32 %v350, 0.0
    %v358 = vpack.c.bf16 %v354, %v354
    %v359 = vpack.c.bf16 %v355, %v355
    %v360 = vpack.c.bf16 %v356, %v356
    %v361 = vpack.c.bf16 %v357, %v357
    %v362 = vld [vmem:[#allocation5] sm:$0xff]
    %v363 = vld [vmem:[#allocation5 + $0x8] sm:$0xff]
    %v364 = vld [vmem:[#allocation5 + $0x10] sm:$0xff]
    %v365 = vld [vmem:[#allocation5 + $0x18] sm:$0xff]
    %v366 = vld [vmem:[#allocation5 + $0x20] sm:$0xff]
    %v367 = vld [vmem:[#allocation5 + $0x28] sm:$0xff]
    %v368 = vld [vmem:[#allocation5 + $0x30] sm:$0xff]
    %v369 = vld [vmem:[#allocation5 + $0x38] sm:$0xff]
    %v370 = vld [vmem:[#allocation5 + $0x40] sm:$0xff]
    %v371 = vld [vmem:[#allocation5 + $0x48] sm:$0xff]
    %v372 = vld [vmem:[#allocation5 + $0x50] sm:$0xff]
    %v373 = vld [vmem:[#allocation5 + $0x58] sm:$0xff]
    %v374 = vld [vmem:[#allocation5 + $0x60] sm:$0xff]
    %v375 = vld [vmem:[#allocation5 + $0x68] sm:$0xff]
    %v376 = vld [vmem:[#allocation5 + $0x70] sm:$0xff]
    %v377 = vld [vmem:[#allocation5 + $0x78] sm:$0xff]
    %v378 = vld [vmem:[#allocation5 + $0x80] sm:$0xff]
    %v379 = vld [vmem:[#allocation5 + $0x88] sm:$0xff]
    %v380 = vld [vmem:[#allocation5 + $0x90] sm:$0xff]
    %v381 = vld [vmem:[#allocation5 + $0x98] sm:$0xff]
    %v382 = vld [vmem:[#allocation5 + $0xa0] sm:$0xff]
    %v383 = vld [vmem:[#allocation5 + $0xa8] sm:$0xff]
    %v384 = vld [vmem:[#allocation5 + $0xb0] sm:$0xff]
    %v385 = vld [vmem:[#allocation5 + $0xb8] sm:$0xff]
    %v386 = vld [vmem:[#allocation5 + $0xc0] sm:$0xff]
    %v387 = vld [vmem:[#allocation5 + $0xc8] sm:$0xff]
    %v388 = vld [vmem:[#allocation5 + $0xd0] sm:$0xff]
    %v389 = vld [vmem:[#allocation5 + $0xd8] sm:$0xff]
    %v390 = vld [vmem:[#allocation5 + $0xe0] sm:$0xff]
    %v391 = vld [vmem:[#allocation5 + $0xe8] sm:$0xff]
    %v392 = vld [vmem:[#allocation5 + $0xf0] sm:$0xff]
    %v393 = vld [vmem:[#allocation5 + $0xf8] sm:$0xff]
    %v394 = vld [vmem:[#allocation5 + $0x100] sm:$0xff]
    %v395 = vld [vmem:[#allocation5 + $0x108] sm:$0xff]
    %v396 = vld [vmem:[#allocation5 + $0x110] sm:$0xff]
    %v397 = vld [vmem:[#allocation5 + $0x118] sm:$0xff]
    %v398 = vld [vmem:[#allocation5 + $0x120] sm:$0xff]
    %v399 = vld [vmem:[#allocation5 + $0x128] sm:$0xff]
    %v400 = vld [vmem:[#allocation5 + $0x130] sm:$0xff]
    %v401 = vld [vmem:[#allocation5 + $0x138] sm:$0xff]
    %v402 = vld [vmem:[#allocation5 + $0x140] sm:$0xff]
    %v403 = vld [vmem:[#allocation5 + $0x148] sm:$0xff]
    %v404 = vld [vmem:[#allocation5 + $0x150] sm:$0xff]
    %v405 = vld [vmem:[#allocation5 + $0x158] sm:$0xff]
    %v406 = vld [vmem:[#allocation5 + $0x160] sm:$0xff]
    %v407 = vld [vmem:[#allocation5 + $0x168] sm:$0xff]
    %v408 = vld [vmem:[#allocation5 + $0x170] sm:$0xff]
    %v409 = vld [vmem:[#allocation5 + $0x178] sm:$0xff]
    %v410 = vld [vmem:[#allocation5 + $0x180] sm:$0xff]
    %v411 = vld [vmem:[#allocation5 + $0x188] sm:$0xff]
    %v412 = vld [vmem:[#allocation5 + $0x190] sm:$0xff]
    %v413 = vld [vmem:[#allocation5 + $0x198] sm:$0xff]
    %v414 = vld [vmem:[#allocation5 + $0x1a0] sm:$0xff]
    %v415 = vld [vmem:[#allocation5 + $0x1a8] sm:$0xff]
    %v416 = vld [vmem:[#allocation5 + $0x1b0] sm:$0xff]
    %v417 = vld [vmem:[#allocation5 + $0x1b8] sm:$0xff]
    %v418 = vld [vmem:[#allocation5 + $0x1c0] sm:$0xff]
    %v419 = vld [vmem:[#allocation5 + $0x1c8] sm:$0xff]
    %v420 = vld [vmem:[#allocation5 + $0x1d0] sm:$0xff]
    %v421 = vld [vmem:[#allocation5 + $0x1d8] sm:$0xff]
    %v422 = vld [vmem:[#allocation5 + $0x1e0] sm:$0xff]
    %v423 = vld [vmem:[#allocation5 + $0x1e8] sm:$0xff]
    %v424 = vld [vmem:[#allocation5 + $0x1f0] sm:$0xff]
    %v425 = vld [vmem:[#allocation5 + $0x1f8] sm:$0xff]
    %v426 = vld [vmem:[%s4] sm:$0x3]
    %v491 = vunpack.c.l.b16 %v362
    %v492 = vunpack.c.h.b16 %v362
    %v493 = vunpack.c.l.b16 %v363
    %v494 = vunpack.c.h.b16 %v363
    %v495 = vunpack.c.l.b16 %v364
    %v496 = vunpack.c.h.b16 %v364
    %v497 = vunpack.c.l.b16 %v365
    %v498 = vunpack.c.h.b16 %v365
    %v499 = vunpack.c.l.b16 %v366
    %v500 = vunpack.c.h.b16 %v366
    %v501 = vunpack.c.l.b16 %v367
    %v502 = vunpack.c.h.b16 %v367
    %v503 = vunpack.c.l.b16 %v368
    %v504 = vunpack.c.h.b16 %v368
    %v505 = vunpack.c.l.b16 %v369
    %v506 = vunpack.c.h.b16 %v369
    %v507 = vunpack.c.l.b16 %v370
    %v508 = vunpack.c.h.b16 %v370
    %v509 = vunpack.c.l.b16 %v371
    %v510 = vunpack.c.h.b16 %v371
    %v511 = vunpack.c.l.b16 %v372
    %v512 = vunpack.c.h.b16 %v372
    %v513 = vunpack.c.l.b16 %v373
    %v514 = vunpack.c.h.b16 %v373
    %v515 = vunpack.c.l.b16 %v374
    %v516 = vunpack.c.h.b16 %v374
    %v517 = vunpack.c.l.b16 %v375
    %v518 = vunpack.c.h.b16 %v375
    %v519 = vunpack.c.l.b16 %v376
    %v520 = vunpack.c.h.b16 %v376
    %v521 = vunpack.c.l.b16 %v377
    %v522 = vunpack.c.h.b16 %v377
    %v523 = vunpack.c.l.b16 %v378
    %v524 = vunpack.c.h.b16 %v378
    %v525 = vunpack.c.l.b16 %v379
    %v526 = vunpack.c.h.b16 %v379
    %v527 = vunpack.c.l.b16 %v380
    %v528 = vunpack.c.h.b16 %v380
    %v529 = vunpack.c.l.b16 %v381
    %v530 = vunpack.c.h.b16 %v381
    %v531 = vunpack.c.l.b16 %v382
    %v532 = vunpack.c.h.b16 %v382
    %v533 = vunpack.c.l.b16 %v383
    %v534 = vunpack.c.h.b16 %v383
    %v535 = vunpack.c.l.b16 %v384
    %v536 = vunpack.c.h.b16 %v384
    %v537 = vunpack.c.l.b16 %v385
    %v538 = vunpack.c.h.b16 %v385
    %v539 = vunpack.c.l.b16 %v386
    %v540 = vunpack.c.h.b16 %v386
    %v541 = vunpack.c.l.b16 %v387
    %v542 = vunpack.c.h.b16 %v387
    %v543 = vunpack.c.l.b16 %v388
    %v544 = vunpack.c.h.b16 %v388
    %v545 = vunpack.c.l.b16 %v389
    %v546 = vunpack.c.h.b16 %v389
    %v547 = vunpack.c.l.b16 %v390
    %v548 = vunpack.c.h.b16 %v390
    %v549 = vunpack.c.l.b16 %v391
    %v550 = vunpack.c.h.b16 %v391
    %v551 = vunpack.c.l.b16 %v392
    %v552 = vunpack.c.h.b16 %v392
    %v553 = vunpack.c.l.b16 %v393
    %v554 = vunpack.c.h.b16 %v393
    %v555 = vunpack.c.l.b16 %v394
    %v556 = vunpack.c.h.b16 %v394
    %v557 = vunpack.c.l.b16 %v395
    %v558 = vunpack.c.h.b16 %v395
    %v559 = vunpack.c.l.b16 %v396
    %v560 = vunpack.c.h.b16 %v396
    %v561 = vunpack.c.l.b16 %v397
    %v562 = vunpack.c.h.b16 %v397
    %v563 = vunpack.c.l.b16 %v398
    %v564 = vunpack.c.h.b16 %v398
    %v565 = vunpack.c.l.b16 %v399
    %v566 = vunpack.c.h.b16 %v399
    %v567 = vunpack.c.l.b16 %v400
    %v568 = vunpack.c.h.b16 %v400
    %v569 = vunpack.c.l.b16 %v401
    %v570 = vunpack.c.h.b16 %v401
    %v571 = vunpack.c.l.b16 %v402
    %v572 = vunpack.c.h.b16 %v402
    %v573 = vunpack.c.l.b16 %v403
    %v574 = vunpack.c.h.b16 %v403
    %v575 = vunpack.c.l.b16 %v404
    %v576 = vunpack.c.h.b16 %v404
    %v577 = vunpack.c.l.b16 %v405
    %v578 = vunpack.c.h.b16 %v405
    %v579 = vunpack.c.l.b16 %v406
    %v580 = vunpack.c.h.b16 %v406
    %v581 = vunpack.c.l.b16 %v407
    %v582 = vunpack.c.h.b16 %v407
    %v583 = vunpack.c.l.b16 %v408
    %v584 = vunpack.c.h.b16 %v408
    %v585 = vunpack.c.l.b16 %v409
    %v586 = vunpack.c.h.b16 %v409
    %v587 = vunpack.c.l.b16 %v410
    %v588 = vunpack.c.h.b16 %v410
    %v589 = vunpack.c.l.b16 %v411
    %v590 = vunpack.c.h.b16 %v411
    %v591 = vunpack.c.l.b16 %v412
    %v592 = vunpack.c.h.b16 %v412
    %v593 = vunpack.c.l.b16 %v413
    %v594 = vunpack.c.h.b16 %v413
    %v595 = vunpack.c.l.b16 %v414
    %v596 = vunpack.c.h.b16 %v414
    %v597 = vunpack.c.l.b16 %v415
    %v598 = vunpack.c.h.b16 %v415
    %v599 = vunpack.c.l.b16 %v416
    %v600 = vunpack.c.h.b16 %v416
    %v601 = vunpack.c.l.b16 %v417
    %v602 = vunpack.c.h.b16 %v417
    %v603 = vunpack.c.l.b16 %v418
    %v604 = vunpack.c.h.b16 %v418
    %v605 = vunpack.c.l.b16 %v419
    %v606 = vunpack.c.h.b16 %v419
    %v607 = vunpack.c.l.b16 %v420
    %v608 = vunpack.c.h.b16 %v420
    %v609 = vunpack.c.l.b16 %v421
    %v610 = vunpack.c.h.b16 %v421
    %v611 = vunpack.c.l.b16 %v422
    %v612 = vunpack.c.h.b16 %v422
    %v613 = vunpack.c.l.b16 %v423
    %v614 = vunpack.c.h.b16 %v423
    %v615 = vunpack.c.l.b16 %v424
    %v616 = vunpack.c.h.b16 %v424
    %v617 = vunpack.c.l.b16 %v425
    %v618 = vunpack.c.h.b16 %v425
    %v619 = vpack.c.b16 %v493, %v491
    %v620 = vpack.c.b16 %v494, %v492
    %v621 = vpack.c.b16 %v497, %v495
    %v622 = vpack.c.b16 %v498, %v496
    %v623 = vpack.c.b16 %v501, %v499
    %v624 = vpack.c.b16 %v502, %v500
    %v625 = vpack.c.b16 %v505, %v503
    %v626 = vpack.c.b16 %v506, %v504
    %v627 = vpack.c.b16 %v509, %v507
    %v628 = vpack.c.b16 %v510, %v508
    %v629 = vpack.c.b16 %v513, %v511
    %v630 = vpack.c.b16 %v514, %v512
    %v631 = vpack.c.b16 %v517, %v515
    %v632 = vpack.c.b16 %v518, %v516
    %v633 = vpack.c.b16 %v521, %v519
    %v634 = vpack.c.b16 %v522, %v520
    %v635 = vpack.c.b16 %v525, %v523
    %v636 = vpack.c.b16 %v526, %v524
    %v637 = vpack.c.b16 %v529, %v527
    %v638 = vpack.c.b16 %v530, %v528
    %v639 = vpack.c.b16 %v533, %v531
    %v640 = vpack.c.b16 %v534, %v532
    %v641 = vpack.c.b16 %v537, %v535
    %v642 = vpack.c.b16 %v538, %v536
    %v643 = vpack.c.b16 %v541, %v539
    %v644 = vpack.c.b16 %v542, %v540
    %v645 = vpack.c.b16 %v545, %v543
    %v646 = vpack.c.b16 %v546, %v544
    %v647 = vpack.c.b16 %v549, %v547
    %v648 = vpack.c.b16 %v550, %v548
    %v649 = vpack.c.b16 %v553, %v551
    %v650 = vpack.c.b16 %v554, %v552
    %v651 = vpack.c.b16 %v557, %v555
    %v652 = vpack.c.b16 %v558, %v556
    %v653 = vpack.c.b16 %v561, %v559
    %v654 = vpack.c.b16 %v562, %v560
    %v655 = vpack.c.b16 %v565, %v563
    %v656 = vpack.c.b16 %v566, %v564
    %v657 = vpack.c.b16 %v569, %v567
    %v658 = vpack.c.b16 %v570, %v568
    %v659 = vpack.c.b16 %v573, %v571
    %v660 = vpack.c.b16 %v574, %v572
    %v661 = vpack.c.b16 %v577, %v575
    %v662 = vpack.c.b16 %v578, %v576
    %v663 = vpack.c.b16 %v581, %v579
    %v664 = vpack.c.b16 %v582, %v580
    %v665 = vpack.c.b16 %v585, %v583
    %v666 = vpack.c.b16 %v586, %v584
    %v667 = vpack.c.b16 %v589, %v587
    %v668 = vpack.c.b16 %v590, %v588
    %v669 = vpack.c.b16 %v593, %v591
    %v670 = vpack.c.b16 %v594, %v592
    %v671 = vpack.c.b16 %v597, %v595
    %v672 = vpack.c.b16 %v598, %v596
    %v673 = vpack.c.b16 %v601, %v599
    %v674 = vpack.c.b16 %v602, %v600
    %v675 = vpack.c.b16 %v605, %v603
    %v676 = vpack.c.b16 %v606, %v604
    %v677 = vpack.c.b16 %v609, %v607
    %v678 = vpack.c.b16 %v610, %v608
    %v679 = vpack.c.b16 %v613, %v611
    %v680 = vpack.c.b16 %v614, %v612
    %v681 = vpack.c.b16 %v617, %v615
    %v682 = vpack.c.b16 %v618, %v616
    %v748 = vlaneseq
    %v749 = vshrl.u32 %v748, 7
    %v750 = vsub.s32 0, %v749
    %v751 = vrot.slane %v426, %v750
    %v752 = vlaneseq
    %v753 = vshrl.u32 %v752, 7
    %v754 = vsub.s32 1, %v753
    %v755 = vrot.slane %v426, %v754
    %758 = vmatprep.subr.bf16.mxu0 %v634
    %759 = vmatpush1.bf16.msra.mxu0 %v633
    %760 = vmatprep.subr.bf16.mxu0 %v632
    %761 = vmatpush1.bf16.msra.mxu0 %v631
    %762 = vmatprep.subr.bf16.mxu0 %v630
    %763 = vmatpush1.bf16.msra.mxu0 %v629
    %764 = vmatprep.subr.bf16.mxu0 %v628
    %765 = vmatpush1.bf16.msra.mxu0 %v627
    %766 = vmatprep.subr.bf16.mxu0 %v626
    %767 = vmatpush1.bf16.msra.mxu0 %v625
    %768 = vmatprep.subr.bf16.mxu0 %v624
    %769 = vmatpush1.bf16.msra.mxu0 %v623
    %770 = vmatprep.subr.bf16.mxu0 %v622
    %771 = vmatpush1.bf16.msra.mxu0 %v621
    %772 = vmatprep.subr.bf16.mxu0 %v620
    %773 = vmatpush1.bf16.msra.mxu0 %v619
    %774 = vmatprep.subr.bf16.mxu0 %v650
    %775 = vmatpush2.bf16.msra.mxu0 %v649
    %776 = vmatprep.subr.bf16.mxu0 %v648
    %777 = vmatpush2.bf16.msra.mxu0 %v647
    %778 = vmatprep.subr.bf16.mxu0 %v646
    %779 = vmatpush2.bf16.msra.mxu0 %v645
    %780 = vmatprep.subr.bf16.mxu0 %v644
    %781 = vmatpush2.bf16.msra.mxu0 %v643
    %782 = vmatprep.subr.bf16.mxu0 %v642
    %783 = vmatpush2.bf16.msra.mxu0 %v641
    %784 = vmatprep.subr.bf16.mxu0 %v640
    %785 = vmatpush2.bf16.msra.mxu0 %v639
    %786 = vmatprep.subr.bf16.mxu0 %v638
    %787 = vmatpush2.bf16.msra.mxu0 %v637
    %788 = vmatprep.subr.bf16.mxu0 %v636
    %789 = vmatpush2.bf16.msra.mxu0 %v635
    %790 = vmatprep.mubr.bf16.mxu0 %v359
    %791 = vmatmul.mubr.bf16.gmra.mxu0 %v358
    %v792 = vpop.f32.mrf.mxu0
    %v793 = vadd.f32 %v751, %v792
    %v794 = vpop.f32.mrf.mxu0
    %v795 = vadd.f32 %v755, %v794
    %v796 = vpop.f32.mrf.mxu0
    %v797 = vpop.f32.mrf.mxu0
    %798 = vdwg.mxu0
    %799 = vmatprep.subr.bf16.mxu0 %v666
    %800 = vmatpush1.bf16.msra.mxu0 %v665
    %801 = vmatprep.subr.bf16.mxu0 %v664
    %802 = vmatpush1.bf16.msra.mxu0 %v663
    %803 = vmatprep.subr.bf16.mxu0 %v662
    %804 = vmatpush1.bf16.msra.mxu0 %v661
    %805 = vmatprep.subr.bf16.mxu0 %v660
    %806 = vmatpush1.bf16.msra.mxu0 %v659
    %807 = vmatprep.subr.bf16.mxu0 %v658
    %808 = vmatpush1.bf16.msra.mxu0 %v657
    %809 = vmatprep.subr.bf16.mxu0 %v656
    %810 = vmatpush1.bf16.msra.mxu0 %v655
    %811 = vmatprep.subr.bf16.mxu0 %v654
    %812 = vmatpush1.bf16.msra.mxu0 %v653
    %813 = vmatprep.subr.bf16.mxu0 %v652
    %814 = vmatpush1.bf16.msra.mxu0 %v651
    %815 = vmatprep.subr.bf16.mxu0 %v682
    %816 = vmatpush2.bf16.msra.mxu0 %v681
    %817 = vmatprep.subr.bf16.mxu0 %v680
    %818 = vmatpush2.bf16.msra.mxu0 %v679
    %819 = vmatprep.subr.bf16.mxu0 %v678
    %820 = vmatpush2.bf16.msra.mxu0 %v677
    %821 = vmatprep.subr.bf16.mxu0 %v676
    %822 = vmatpush2.bf16.msra.mxu0 %v675
    %823 = vmatprep.subr.bf16.mxu0 %v674
    %824 = vmatpush2.bf16.msra.mxu0 %v673
    %825 = vmatprep.subr.bf16.mxu0 %v672
    %826 = vmatpush2.bf16.msra.mxu0 %v671
    %827 = vmatprep.subr.bf16.mxu0 %v670
    %828 = vmatpush2.bf16.msra.mxu0 %v669
    %829 = vmatprep.subr.bf16.mxu0 %v668
    %830 = vmatpush2.bf16.msra.mxu0 %v667
    %831 = vmatprep.mubr.bf16.mxu0 %v361
    %832 = vmatmul.mubr.bf16.gmra.mxu0 %v360
    %v833 = vpop.f32.mrf.mxu0
    %v834 = vadd.f32 %v793, %v833
    %v835 = vpop.f32.mrf.mxu0
    %v836 = vadd.f32 %v795, %v835
    %v837 = vpop.f32.mrf.mxu0
    %v838 = vpop.f32.mrf.mxu0
    %839 = vdwg.mxu0
    %v840 = vmax.f32 %v834, 0.0
    %v841 = vmax.f32 %v836, 0.0
    %v842 = vpack.c.bf16 %v840, %v840
    %v843 = vpack.c.bf16 %v841, %v841
    %v844 = vld [vmem:[%s5] sm:$0xf]
    %v845 = vld [vmem:[%s5 + $0x4] sm:$0xf]
    %v846 = vld [vmem:[%s5 + $0x8] sm:$0xf]
    %v847 = vld [vmem:[%s5 + $0xc] sm:$0xf]
    %v848 = vld [vmem:[%s5 + $0x10] sm:$0xf]
    %v849 = vld [vmem:[%s5 + $0x14] sm:$0xf]
    %v850 = vld [vmem:[%s5 + $0x18] sm:$0xf]
    %v851 = vld [vmem:[%s5 + $0x1c] sm:$0xf]
    %v852 = vld [vmem:[%s5 + $0x20] sm:$0xf]
    %v853 = vld [vmem:[%s5 + $0x24] sm:$0xf]
    %v854 = vld [vmem:[%s5 + $0x28] sm:$0xf]
    %v855 = vld [vmem:[%s5 + $0x2c] sm:$0xf]
    %v856 = vld [vmem:[%s5 + $0x30] sm:$0xf]
    %v857 = vld [vmem:[%s5 + $0x34] sm:$0xf]
    %v858 = vld [vmem:[%s5 + $0x38] sm:$0xf]
    %v859 = vld [vmem:[%s5 + $0x3c] sm:$0xf]
    %v860 = vld [vmem:[%s5 + $0x40] sm:$0xf]
    %v861 = vld [vmem:[%s5 + $0x44] sm:$0xf]
    %v862 = vld [vmem:[%s5 + $0x48] sm:$0xf]
    %v863 = vld [vmem:[%s5 + $0x4c] sm:$0xf]
    %v864 = vld [vmem:[%s5 + $0x50] sm:$0xf]
    %v865 = vld [vmem:[%s5 + $0x54] sm:$0xf]
    %v866 = vld [vmem:[%s5 + $0x58] sm:$0xf]
    %v867 = vld [vmem:[%s5 + $0x5c] sm:$0xf]
    %v868 = vld [vmem:[%s5 + $0x60] sm:$0xf]
    %v869 = vld [vmem:[%s5 + $0x64] sm:$0xf]
    %v870 = vld [vmem:[%s5 + $0x68] sm:$0xf]
    %v871 = vld [vmem:[%s5 + $0x6c] sm:$0xf]
    %v872 = vld [vmem:[%s5 + $0x70] sm:$0xf]
    %v873 = vld [vmem:[%s5 + $0x74] sm:$0xf]
    %v874 = vld [vmem:[%s5 + $0x78] sm:$0xf]
    %v875 = vld [vmem:[%s5 + $0x7c] sm:$0xf]
    %v876 = vld [vmem:[%s6] sm:$0x1]
    %v909 = vunpack.c.l.b16 %v844
    %v910 = vunpack.c.l.b16 %v845
    %v911 = vunpack.c.l.b16 %v846
    %v912 = vunpack.c.l.b16 %v847
    %v913 = vunpack.c.l.b16 %v848
    %v914 = vunpack.c.l.b16 %v849
    %v915 = vunpack.c.l.b16 %v850
    %v916 = vunpack.c.l.b16 %v851
    %v917 = vunpack.c.l.b16 %v852
    %v918 = vunpack.c.l.b16 %v853
    %v919 = vunpack.c.l.b16 %v854
    %v920 = vunpack.c.l.b16 %v855
    %v921 = vunpack.c.l.b16 %v856
    %v922 = vunpack.c.l.b16 %v857
    %v923 = vunpack.c.l.b16 %v858
    %v924 = vunpack.c.l.b16 %v859
    %v925 = vunpack.c.l.b16 %v860
    %v926 = vunpack.c.l.b16 %v861
    %v927 = vunpack.c.l.b16 %v862
    %v928 = vunpack.c.l.b16 %v863
    %v929 = vunpack.c.l.b16 %v864
    %v930 = vunpack.c.l.b16 %v865
    %v931 = vunpack.c.l.b16 %v866
    %v932 = vunpack.c.l.b16 %v867
    %v933 = vunpack.c.l.b16 %v868
    %v934 = vunpack.c.l.b16 %v869
    %v935 = vunpack.c.l.b16 %v870
    %v936 = vunpack.c.l.b16 %v871
    %v937 = vunpack.c.l.b16 %v872
    %v938 = vunpack.c.l.b16 %v873
    %v939 = vunpack.c.l.b16 %v874
    %v940 = vunpack.c.l.b16 %v875
    %v941 = vpack.c.b16 %v910, %v909
    %v942 = vpack.c.b16 %v912, %v911
    %v943 = vpack.c.b16 %v914, %v913
    %v944 = vpack.c.b16 %v916, %v915
    %v945 = vpack.c.b16 %v918, %v917
    %v946 = vpack.c.b16 %v920, %v919
    %v947 = vpack.c.b16 %v922, %v921
    %v948 = vpack.c.b16 %v924, %v923
    %v949 = vpack.c.b16 %v926, %v925
    %v950 = vpack.c.b16 %v928, %v927
    %v951 = vpack.c.b16 %v930, %v929
    %v952 = vpack.c.b16 %v932, %v931
    %v953 = vpack.c.b16 %v934, %v933
    %v954 = vpack.c.b16 %v936, %v935
    %v955 = vpack.c.b16 %v938, %v937
    %v956 = vpack.c.b16 %v940, %v939
    %973 = vmatprep.subr.bf16.mxu0 0
    %974 = vmatpush1.bf16.msra.mxu0 %v948
    %975 = vmatprep.subr.bf16.mxu0 0
    %976 = vmatpush1.bf16.msra.mxu0 %v947
    %977 = vmatprep.subr.bf16.mxu0 0
    %978 = vmatpush1.bf16.msra.mxu0 %v946
    %979 = vmatprep.subr.bf16.mxu0 0
    %980 = vmatpush1.bf16.msra.mxu0 %v945
    %981 = vmatprep.subr.bf16.mxu0 0
    %982 = vmatpush1.bf16.msra.mxu0 %v944
    %983 = vmatprep.subr.bf16.mxu0 0
    %984 = vmatpush1.bf16.msra.mxu0 %v943
    %985 = vmatprep.subr.bf16.mxu0 0
    %986 = vmatpush1.bf16.msra.mxu0 %v942
    %987 = vmatprep.subr.bf16.mxu0 0
    %988 = vmatpush1.bf16.msra.mxu0 %v941
    %989 = vmatprep.subr.bf16.mxu0 0
    %990 = vmatpush2.bf16.msra.mxu0 %v956
    %991 = vmatprep.subr.bf16.mxu0 0
    %992 = vmatpush2.bf16.msra.mxu0 %v955
    %993 = vmatprep.subr.bf16.mxu0 0
    %994 = vmatpush2.bf16.msra.mxu0 %v954
    %995 = vmatprep.subr.bf16.mxu0 0
    %996 = vmatpush2.bf16.msra.mxu0 %v953
    %997 = vmatprep.subr.bf16.mxu0 0
    %998 = vmatpush2.bf16.msra.mxu0 %v952
    %999 = vmatprep.subr.bf16.mxu0 0
    %1000 = vmatpush2.bf16.msra.mxu0 %v951
    %1001 = vmatprep.subr.bf16.mxu0 0
    %1002 = vmatpush2.bf16.msra.mxu0 %v950
    %1003 = vmatprep.subr.bf16.mxu0 0
    %1004 = vmatpush2.bf16.msra.mxu0 %v949
    %1005 = vmatprep.mubr.bf16.mxu0 %v843
    %1006 = vmatmul.mubr.bf16.gmra.mxu0 %v842
    %v1007 = vpop.f32.mrf.mxu0
    %v1008 = vadd.f32 %v876, %v1007
    %v1009 = vpop.f32.mrf.mxu0
    %v1010 = vpop.f32.mrf.mxu0
    %v1011 = vpop.f32.mrf.mxu0
    %1012 = vdwg.mxu0
    %vm1013 = vcmask 319488
    %1014 = vst.msk [vmem:[#allocation7] sm:$0x1] %vm1013, %v1008
    // Predicated region
    $region38: #{tpu_custom_call.1} parent=1 // pred_check
      _
    $region39: #{tpu_custom_call.1} parent=1 // pred_check_branch
      %1016 = sbr.rel (0) target = $region41
    $region40: #{tpu_custom_call.1} parent=1 // pred_region
      %s1018 = ssub.s32 16, 16
      %1019 = vsyncadd [#allocation4], %s1018
      %s1021 = sshll.u32 [#allocation7], 4
      %s1022 = int_to_ptr.vmem [resolvable:$true] %s1021
      %1024 = dma.vmem_to_hbm [thread:$0]  %s1022, 16, %s7, [#allocation4]
    $region41: #{tpu_custom_call.1} parent=1 // pred_fallthru
      _
    // Predicated region
    $region42: #{tpu_custom_call.1} parent=1 // pred_check
      _
    $region43: #{tpu_custom_call.1} parent=1 // pred_check_branch
      %1026 = sbr.rel (0) target = $region45
    $region44: #{tpu_custom_call.1} parent=1 // pred_region
      %1027 = dma.done [#allocation4], 16
    $region45: #{tpu_custom_call.1} parent=1 // pred_fallthru
      _
    %1028 = vsyncpa [#allocation3], 1
    %1029 = vsyncpa [#allocation6], 1
    %1030 = vsyncpa [#allocation4], 1

</llo_original>
